<compile_context>
chip_gen: v7x
topology: tpu7x:2x2x1
jax: 0.10.0
libtpu: 0.0.40
codegen_flags: <defaults>
</compile_context>

<pallas_src>
import functools

import jax
import jax.numpy as jnp
from jax.experimental import pallas as pl
from jax.experimental.pallas import tpu as pltpu


def _round_up(n: int, m: int) -> int:
    return ((n + m - 1) // m) * m


def _pick_tile(dim: int, candidates) -> int:
    for c in candidates:
        if dim % c == 0:
            return c
    return dim


def _vmem_capacity_bytes() -> int:
    try:
        return int(pltpu.get_tpu_info().vmem_capacity_bytes)
    except Exception:
        return 64 * 1024 * 1024  # conservative (v7x per-TC VMEM)


# ---------------------------------------------------------------------------
# Fused kernel: whole MLP in one pallas_call, activations never leave VMEM.
# ---------------------------------------------------------------------------
def _mlp_fused_kernel(*refs, num_layers: int, mxu_dtype, wide_slab: int = 1024):
    """refs layout:
      refs[0]          : x tile        (B_TILE, D0_pad)        VMEM
      refs[1 + 2*l]    : W_l (pre-T)   (Dl_pad, Dl+1_pad)      VMEM (resident)
      refs[2 + 2*l]    : b_l           (1, Dl+1_pad)           VMEM (resident)
      refs[-1]         : output tile   (B_TILE, DL_pad)        VMEM
    """
    x_ref = refs[0]
    o_ref = refs[-1]
    wb_refs = refs[1:-1]

    h = x_ref[...].astype(jnp.float32)
    for l in range(num_layers):
        w_ref = wb_refs[2 * l]              # (D_in_pad, D_out_pad), already transposed
        b = wb_refs[2 * l + 1][...].astype(jnp.float32)   # (1, D_out_pad)
        a = h.astype(mxu_dtype)             # MXU operand dtype (f32 or bf16)
        d_out = w_ref.shape[1]
        if d_out >= 2048:
            # Slab-wise evaluation bounds the live f32 intermediates (vreg/VMEM
            # pressure) for very wide layers; exact, since lane-aligned slabs.
            parts = []
            for c0 in range(0, d_out, wide_slab):
                c1 = min(c0 + wide_slab, d_out)
                parts.append(
                    jnp.dot(a, w_ref[:, c0:c1], preferred_element_type=jnp.float32)
                    + b[:, c0:c1]
                )
            h = jnp.concatenate(parts, axis=-1)
        else:
            h = jnp.dot(a, w_ref[...], preferred_element_type=jnp.float32) + b
        if l + 1 < num_layers:
            h = jnp.maximum(h, 0.0)         # ReLU on hidden layers only
    o_ref[...] = h.astype(o_ref.dtype)


def _build_fused_call(padded, num_layers, B_TILE, B_pad, out_dtype,
                      single_buffer, vmem_limit_bytes, mxu_dtype,
                      flops, bytes_accessed):
    in_specs = [pl.BlockSpec((B_TILE, padded[0]), lambda i: (i, 0))]
    for l in range(num_layers):
        w_shape = (padded[l], padded[l + 1])
        b_shape = (1, padded[l + 1])
        if single_buffer:
            # Constant index_map -> resident across grid steps; Buffered(1)
            # avoids allocating a useless second buffer for each weight.
            in_specs.append(pl.BlockSpec(w_shape, lambda i: (0, 0),
                                         pipeline_mode=pl.Buffered(1)))
            in_specs.append(pl.BlockSpec(b_shape, lambda i: (0, 0),
                                         pipeline_mode=pl.Buffered(1)))
        else:
            in_specs.append(pl.BlockSpec(w_shape, lambda i: (0, 0)))
            in_specs.append(pl.BlockSpec(b_shape, lambda i: (0, 0)))
    out_specs = pl.BlockSpec((B_TILE, padded[-1]), lambda i: (i, 0))

    kernel = functools.partial(_mlp_fused_kernel, num_layers=num_layers,
                               mxu_dtype=mxu_dtype)
    return pl.pallas_call(
        kernel,
        out_shape=jax.ShapeDtypeStruct((B_pad, padded[-1]), out_dtype),
        grid=(B_pad // B_TILE,),
        in_specs=in_specs,
        out_specs=out_specs,
        compiler_params=pltpu.CompilerParams(
            dimension_semantics=("parallel",),
            vmem_limit_bytes=int(vmem_limit_bytes),
        ),
        cost_estimate=pl.CostEstimate(
            flops=flops, transcendentals=0, bytes_accessed=bytes_accessed),
    )


# ---------------------------------------------------------------------------
# Streaming fallback: per-layer tiled matmul (used when the resident weight
# set would not fit in VMEM, e.g. very wide layers on v7x's 64 MiB/TC).
# ---------------------------------------------------------------------------
def _linear_stream_kernel(x_ref, w_ref, b_ref, o_ref, acc_ref, *,
                          apply_relu: bool, mxu_dtype):
    k = pl.program_id(2)

    @pl.when(k == 0)
    def _():
        acc_ref[...] = jnp.zeros_like(acc_ref)

    acc_ref[...] += jnp.dot(x_ref[...].astype(mxu_dtype), w_ref[...],
                            preferred_element_type=jnp.float32)

    @pl.when(k == pl.num_programs(2) - 1)
    def _():
        r = acc_ref[...] + b_ref[...].astype(jnp.float32)
        if apply_relu:
            r = jnp.maximum(r, 0.0)
        o_ref[...] = r.astype(o_ref.dtype)


def _streamed_linear(h, Wt, bp, *, apply_relu, mxu_dtype, out_dtype):
    M, K = h.shape
    K2, N = Wt.shape
    assert K == K2
    tm = _pick_tile(M, (256, 128, 64, 32, 16, 8))
    tn = _pick_tile(N, (512, 256, 128))
    tk = _pick_tile(K, (512, 256, 128))
    kernel = functools.partial(_linear_stream_kernel,
                               apply_relu=apply_relu, mxu_dtype=mxu_dtype)
    return pl.pallas_call(
        kernel,
        out_shape=jax.ShapeDtypeStruct((M, N), out_dtype),
        grid=(M // tm, N // tn, K // tk),
        in_specs=[
            pl.BlockSpec((tm, tk), lambda i, j, k: (i, k)),
            pl.BlockSpec((tk, tn), lambda i, j, k: (k, j)),
            pl.BlockSpec((1, tn), lambda i, j, k: (0, j)),
        ],
        out_specs=pl.BlockSpec((tm, tn), lambda i, j, k: (i, j)),
        scratch_shapes=[pltpu.VMEM((tm, tn), jnp.float32)],
        compiler_params=pltpu.CompilerParams(
            dimension_semantics=("parallel", "parallel", "arbitrary")),
    )(h, Wt, bp)


# ---------------------------------------------------------------------------
# Host-side wrappers.
# ---------------------------------------------------------------------------
def prepare_mlp_params(params, mxu_dtype=jnp.float32):
    """One-time weight layout: transpose nn.Linear weights to (D_in, D_out),
    zero-pad every feature dim to a multiple of 128, cast to `mxu_dtype`
    (f32 or bf16 operands for the MXU; biases stay f32).  Do this once and
    reuse across forward calls."""
    assert len(params) % 2 == 0
    num_layers = len(params) // 2
    sizes = [params[0].shape[1]] + [params[2 * l].shape[0] for l in range(num_layers)]
    padded = [_round_up(s, 128) for s in sizes]

    wbs = []
    for l in range(num_layers):
        W = params[2 * l]                  # (d_out, d_in), PyTorch nn.Linear layout
        b = params[2 * l + 1]              # (d_out,)
        d_out, d_in = W.shape
        Wt = jnp.zeros((padded[l], padded[l + 1]), mxu_dtype)
        Wt = Wt.at[:d_in, :d_out].set(W.T.astype(mxu_dtype))
        bp = jnp.zeros((1, padded[l + 1]), jnp.float32)
        bp = bp.at[0, :d_out].set(b.astype(jnp.float32))
        wbs += [Wt, bp]

    return {"wbs": wbs, "sizes": sizes, "padded": padded,
            "num_layers": num_layers, "mxu_dtype": mxu_dtype}


def mlp_forward_prepared(x, prepared, *, batch_tile: int = 256,
                         force_streaming: bool = False):
    """Fast path: uses pre-laid-out weights from prepare_mlp_params."""
    sizes = prepared["sizes"]
    padded = prepared["padded"]
    L = prepared["num_layers"]
    mxu_dtype = prepared["mxu_dtype"]
    wbs = prepared["wbs"]

    B, D_in = x.shape
    assert D_in == sizes[0], (D_in, sizes[0])

    wsize = jnp.dtype(mxu_dtype).itemsize
    w_bytes = sum(padded[l] * padded[l + 1] for l in range(L)) * wsize
    b_bytes = sum(8 * padded[l + 1] * 4 for l in range(L))  # f32 bias, 8-sublane padded
    capacity = _vmem_capacity_bytes()
    budget = (capacity * 3) // 4

    # --- batch tiling --------------------------------------------------------
    B_pad8 = _round_up(B, 8)
    B_TILE = min(_round_up(batch_tile, 8), B_pad8)

    def footprint(bt):
        io = 2 * bt * padded[0] * x.dtype.itemsize \
             + 2 * bt * padded[-1] * x.dtype.itemsize
        inter = 2 * bt * max(padded) * 4               # live f32 intermediates
        return w_bytes + b_bytes + io + inter

    while B_TILE > 8 and footprint(B_TILE) > budget:
        B_TILE = max(8, _round_up(B_TILE // 2, 8))

    # Give the megacore (v7x) at least 2 grid steps when the batch allows it.
    if B_pad8 // B_TILE <= 1 and B_pad8 >= 16:
        B_TILE = _round_up((B_pad8 + 1) // 2, 8)
    B_pad = _round_up(B_pad8, B_TILE)

    x_p = jnp.zeros((B_pad, padded[0]), x.dtype).at[:B, :D_in].set(x)

    use_streaming = force_streaming \
        or (w_bytes + b_bytes > budget) \
        or footprint(B_TILE) > budget

    if use_streaming:
        # Weights do not fit resident in VMEM: stream each layer through a
        # tiled matmul (K-reduction grid axis). Activations round-trip HBM,
        # acceptable only in this regime.
        h = x_p
        for l in range(L):
            apply_relu = (l + 1 < L)
            h = _streamed_linear(h, wbs[2 * l], wbs[2 * l + 1],
                                 apply_relu=apply_relu, mxu_dtype=mxu_dtype,
                                 out_dtype=x.dtype)
        out_p = h
    else:
        flops = 2 * B_pad * sum(padded[l] * padded[l + 1] for l in range(L))
        bytes_accessed = (
            x_p.size * x_p.dtype.itemsize
            + sum(a.size * a.dtype.itemsize for a in wbs)
            + B_pad * padded[-1] * x.dtype.itemsize
        )
        vmem_limit = int(min(budget,
                             max(footprint(B_TILE) + w_bytes, 32 * 1024 * 1024)))

        out_p, last_err = None, None
        for single_buffer in (True, False):
            try:
                call = _build_fused_call(
                    padded, L, B_TILE, B_pad, x.dtype, single_buffer,
                    vmem_limit, mxu_dtype, flops, bytes_accessed)
                out_p = call(x_p, *wbs)
                break
            except Exception as e:   # retry without Buffered(1) on older jax
                last_err = e
                out_p = None
        if out_p is None:
            raise last_err

    # Strip batch / feature padding.
    return out_p[:B, : sizes[-1]]


def mlp_forward(x, params, *, batch_tile: int = 256, mxu_dtype=jnp.float32):
    """Convenience wrapper (pays the layout cost every call; prefer
    prepare_mlp_params + mlp_forward_prepared, or jax.jit this)."""
    prepared = prepare_mlp_params(params, mxu_dtype=mxu_dtype)
    return mlp_forward_prepared(x, prepared, batch_tile=batch_tile)


# ---------------------------------------------------------------------------
# Reference + init helpers.
# ---------------------------------------------------------------------------
def mlp_reference(x, params):
    """Pure-JAX reference of the same forward pass."""
    num_layers = len(params) // 2
    hidden = x
    for l in range(0, len(params), 2):
        W, b = params[l], params[l + 1]
        hidden = hidden @ W.T + b
        if (l // 2 + 1) < num_layers:
            hidden = jnp.maximum(hidden, 0.0)
    return hidden


def init_params(key, layer_sizes, weight_std=0.1, bias_std=0.1):
    """Deterministic 'normal' init (matches the module's 'normal' init path)."""
    params = []
    for l in range(len(layer_sizes) - 1):
        d_in, d_out = layer_sizes[l], layer_sizes[l + 1]
        key, kw, kb = jax.random.split(key, 3)
        W = weight_std * jax.random.normal(kw, (d_out, d_in), dtype=jnp.float32)
        b = bias_std * jax.random.normal(kb, (d_out,), dtype=jnp.float32)
        params.append(W)
        params.append(b)
    return params


if __name__ == "__main__":
    # Small shapes consistent with Mlp(n_input=16, hidden_nodes=[32, 32], n_output=4)
    batch = 8
    n_input = 16
    hidden_nodes = [32, 32]
    n_output = 4
    layer_sizes = [n_input] + hidden_nodes + [n_output]

    key = jax.random.PRNGKey(0)
    key, kx = jax.random.split(key)
    x = jax.random.normal(kx, (batch, n_input), dtype=jnp.float32)
    params = init_params(key, layer_sizes)

    ref = mlp_reference(x, params)

    # 1) Fused resident-weight path, f32 MXU operands.
    prepared_f32 = prepare_mlp_params(params, mxu_dtype=jnp.float32)
    out = jax.block_until_ready(mlp_forward_prepared(x, prepared_f32))
    assert out.shape == (batch, n_output), out.shape
    assert jnp.allclose(out, ref, atol=1e-4, rtol=1e-4), "f32 fused mismatch vs reference"

    # 2) bf16 MXU feed (opt-in), f32 accumulation — looser tolerance.
    prepared_bf16 = prepare_mlp_params(params, mxu_dtype=jnp.bfloat16)
    out_bf16 = jax.block_until_ready(mlp_forward_prepared(x, prepared_bf16))
    assert out_bf16.shape == (batch, n_output)
    assert jnp.allclose(out_bf16, ref, atol=5e-2, rtol=5e-2), "bf16 fused mismatch vs reference"

    # 3) Streaming fallback path (weights-too-big-for-VMEM regime), forced here.
    out_stream = jax.block_until_ready(
        mlp_forward_prepared(x, prepared_f32, force_streaming=True))
    assert jnp.allclose(out_stream, ref, atol=1e-4, rtol=1e-4), "streamed mismatch vs reference"

    print("KERNEL_OK")
</pallas_src>

<mosaic_0001>
module attributes {stable_mosaic.version = 11 : i64} {
  func.func @_mlp_fused_kernel(%arg0: i32, %arg1: memref<8x128xf32, #tpu.memory_space<vmem>>, %arg2: memref<128x128xf32, #tpu.memory_space<vmem>>, %arg3: memref<1x128xf32, #tpu.memory_space<vmem>>, %arg4: memref<128x128xf32, #tpu.memory_space<vmem>>, %arg5: memref<1x128xf32, #tpu.memory_space<vmem>>, %arg6: memref<128x128xf32, #tpu.memory_space<vmem>>, %arg7: memref<1x128xf32, #tpu.memory_space<vmem>>, %arg8: memref<8x128xf32, #tpu.memory_space<vmem>>) attributes {dimension_semantics = [#tpu.dimension_semantics<parallel>], iteration_bounds = array<i64: 1>, scalar_prefetch = 0 : i64, scratch_operands = 0 : i64, tpu.core_type = #tpu.core_type<tc>, window_params = [{transform_indices = @transform_0, window_bounds = array<i64: 8, 128>}, {pipeline_mode = #tpu.pipeline_mode<synchronous>, transform_indices = @transform_1, window_bounds = array<i64: 128, 128>}, {pipeline_mode = #tpu.pipeline_mode<synchronous>, transform_indices = @transform_2, window_bounds = array<i64: 1, 128>}, {pipeline_mode = #tpu.pipeline_mode<synchronous>, transform_indices = @transform_3, window_bounds = array<i64: 128, 128>}, {pipeline_mode = #tpu.pipeline_mode<synchronous>, transform_indices = @transform_4, window_bounds = array<i64: 1, 128>}, {pipeline_mode = #tpu.pipeline_mode<synchronous>, transform_indices = @transform_5, window_bounds = array<i64: 128, 128>}, {pipeline_mode = #tpu.pipeline_mode<synchronous>, transform_indices = @transform_6, window_bounds = array<i64: 1, 128>}, {transform_indices = @transform_7, window_bounds = array<i64: 8, 128>}]} {
    %c0 = arith.constant 0 : index
    %c0_0 = arith.constant 0 : index
    %0 = vector.load %arg1[%c0, %c0_0] : memref<8x128xf32, #tpu.memory_space<vmem>>, vector<8x128xf32>
    %c0_1 = arith.constant 0 : index
    %c0_2 = arith.constant 0 : index
    %1 = vector.load %arg3[%c0_1, %c0_2] : memref<1x128xf32, #tpu.memory_space<vmem>>, vector<1x128xf32>
    %c0_3 = arith.constant 0 : index
    %c0_4 = arith.constant 0 : index
    %2 = vector.load %arg2[%c0_3, %c0_4] : memref<128x128xf32, #tpu.memory_space<vmem>>, vector<128x128xf32>
    %cst = arith.constant dense<0.000000e+00> : vector<8x128xf32>
    %3 = tpu.matmul %0, %2, %cst {dimension_numbers = #tpu.dot_dimension_numbers<[1], [0], [0], [1], [0, 0, 1, 1], [], []>} : vector<8x128xf32>, vector<128x128xf32>, vector<8x128xf32> -> vector<8x128xf32>
    %4 = vector.broadcast %1 : vector<1x128xf32> to vector<8x128xf32>
    %5 = arith.addf %3, %4 : vector<8x128xf32>
    %cst_5 = arith.constant 0.000000e+00 : f32
    %6 = vector.broadcast %cst_5 : f32 to vector<8x128xf32>
    %7 = arith.maximumf %5, %6 : vector<8x128xf32>
    %c0_6 = arith.constant 0 : index
    %c0_7 = arith.constant 0 : index
    %8 = vector.load %arg5[%c0_6, %c0_7] : memref<1x128xf32, #tpu.memory_space<vmem>>, vector<1x128xf32>
    %c0_8 = arith.constant 0 : index
    %c0_9 = arith.constant 0 : index
    %9 = vector.load %arg4[%c0_8, %c0_9] : memref<128x128xf32, #tpu.memory_space<vmem>>, vector<128x128xf32>
    %cst_10 = arith.constant dense<0.000000e+00> : vector<8x128xf32>
    %10 = tpu.matmul %7, %9, %cst_10 {dimension_numbers = #tpu.dot_dimension_numbers<[1], [0], [0], [1], [0, 0, 1, 1], [], []>} : vector<8x128xf32>, vector<128x128xf32>, vector<8x128xf32> -> vector<8x128xf32>
    %11 = vector.broadcast %8 : vector<1x128xf32> to vector<8x128xf32>
    %12 = arith.addf %10, %11 : vector<8x128xf32>
    %cst_11 = arith.constant 0.000000e+00 : f32
    %13 = vector.broadcast %cst_11 : f32 to vector<8x128xf32>
    %14 = arith.maximumf %12, %13 : vector<8x128xf32>
    %c0_12 = arith.constant 0 : index
    %c0_13 = arith.constant 0 : index
    %15 = vector.load %arg7[%c0_12, %c0_13] : memref<1x128xf32, #tpu.memory_space<vmem>>, vector<1x128xf32>
    %c0_14 = arith.constant 0 : index
    %c0_15 = arith.constant 0 : index
    %16 = vector.load %arg6[%c0_14, %c0_15] : memref<128x128xf32, #tpu.memory_space<vmem>>, vector<128x128xf32>
    %cst_16 = arith.constant dense<0.000000e+00> : vector<8x128xf32>
    %17 = tpu.matmul %14, %16, %cst_16 {dimension_numbers = #tpu.dot_dimension_numbers<[1], [0], [0], [1], [0, 0, 1, 1], [], []>} : vector<8x128xf32>, vector<128x128xf32>, vector<8x128xf32> -> vector<8x128xf32>
    %18 = vector.broadcast %15 : vector<1x128xf32> to vector<8x128xf32>
    %19 = arith.addf %17, %18 : vector<8x128xf32>
    %c0_17 = arith.constant 0 : index
    %c0_18 = arith.constant 0 : index
    %20 = vector.load %arg8[%c0_17, %c0_18] : memref<8x128xf32, #tpu.memory_space<vmem>>, vector<8x128xf32>
    tpu.vector_store %arg8[%c0_17, %c0_18], %19 {strides = array<i32>} : memref<8x128xf32, #tpu.memory_space<vmem>>, vector<8x128xf32>,
    return
  }
  func.func @transform_0(%arg0: i32) -> (i32, i32) {
    %c0_i32 = arith.constant 0 : i32
    %c0_i32_0 = arith.constant 0 : i32
    return %arg0, %c0_i32 : i32, i32
  }
  func.func @transform_1(%arg0: i32) -> (i32, i32) {
    %c0_i32 = arith.constant 0 : i32
    %c0_i32_0 = arith.constant 0 : i32
    %c0_i32_1 = arith.constant 0 : i32
    return %c0_i32, %c0_i32_0 : i32, i32
  }
  func.func @transform_2(%arg0: i32) -> (i32, i32) {
    %c0_i32 = arith.constant 0 : i32
    %c0_i32_0 = arith.constant 0 : i32
    %c0_i32_1 = arith.constant 0 : i32
    return %c0_i32, %c0_i32_0 : i32, i32
  }
  func.func @transform_3(%arg0: i32) -> (i32, i32) {
    %c0_i32 = arith.constant 0 : i32
    %c0_i32_0 = arith.constant 0 : i32
    %c0_i32_1 = arith.constant 0 : i32
    return %c0_i32, %c0_i32_0 : i32, i32
  }
  func.func @transform_4(%arg0: i32) -> (i32, i32) {
    %c0_i32 = arith.constant 0 : i32
    %c0_i32_0 = arith.constant 0 : i32
    %c0_i32_1 = arith.constant 0 : i32
    return %c0_i32, %c0_i32_0 : i32, i32
  }
  func.func @transform_5(%arg0: i32) -> (i32, i32) {
    %c0_i32 = arith.constant 0 : i32
    %c0_i32_0 = arith.constant 0 : i32
    %c0_i32_1 = arith.constant 0 : i32
    return %c0_i32, %c0_i32_0 : i32, i32
  }
  func.func @transform_6(%arg0: i32) -> (i32, i32) {
    %c0_i32 = arith.constant 0 : i32
    %c0_i32_0 = arith.constant 0 : i32
    %c0_i32_1 = arith.constant 0 : i32
    return %c0_i32, %c0_i32_0 : i32, i32
  }
  func.func @transform_7(%arg0: i32) -> (i32, i32) {
    %c0_i32 = arith.constant 0 : i32
    %c0_i32_0 = arith.constant 0 : i32
    return %arg0, %c0_i32 : i32, i32
  }
}

module attributes {stable_mosaic.version = 11 : i64} {
  func.func @_mlp_fused_kernel(%arg0: i32, %arg1: memref<8x128xf32, #tpu.memory_space<vmem>>, %arg2: memref<128x128xf32, #tpu.memory_space<vmem>>, %arg3: memref<1x128xf32, #tpu.memory_space<vmem>>, %arg4: memref<128x128xf32, #tpu.memory_space<vmem>>, %arg5: memref<1x128xf32, #tpu.memory_space<vmem>>, %arg6: memref<128x128xf32, #tpu.memory_space<vmem>>, %arg7: memref<1x128xf32, #tpu.memory_space<vmem>>, %arg8: memref<8x128xf32, #tpu.memory_space<vmem>>) attributes {dimension_semantics = [#tpu.dimension_semantics<parallel>], iteration_bounds = array<i64: 1>, scalar_prefetch = 0 : i64, scratch_operands = 0 : i64, tpu.core_type = #tpu.core_type<tc>, window_params = [{transform_indices = @transform_0, window_bounds = array<i64: 8, 128>}, {pipeline_mode = #tpu.pipeline_mode<synchronous>, transform_indices = @transform_1, window_bounds = array<i64: 128, 128>}, {pipeline_mode = #tpu.pipeline_mode<synchronous>, transform_indices = @transform_2, window_bounds = array<i64: 1, 128>}, {pipeline_mode = #tpu.pipeline_mode<synchronous>, transform_indices = @transform_3, window_bounds = array<i64: 128, 128>}, {pipeline_mode = #tpu.pipeline_mode<synchronous>, transform_indices = @transform_4, window_bounds = array<i64: 1, 128>}, {pipeline_mode = #tpu.pipeline_mode<synchronous>, transform_indices = @transform_5, window_bounds = array<i64: 128, 128>}, {pipeline_mode = #tpu.pipeline_mode<synchronous>, transform_indices = @transform_6, window_bounds = array<i64: 1, 128>}, {transform_indices = @transform_7, window_bounds = array<i64: 8, 128>}]} {
    %c0 = arith.constant 0 : index
    %c0_0 = arith.constant 0 : index
    %0 = vector.load %arg1[%c0, %c0_0] : memref<8x128xf32, #tpu.memory_space<vmem>>, vector<8x128xf32>
    %c0_1 = arith.constant 0 : index
    %c0_2 = arith.constant 0 : index
    %1 = vector.load %arg3[%c0_1, %c0_2] : memref<1x128xf32, #tpu.memory_space<vmem>>, vector<1x128xf32>
    %c0_3 = arith.constant 0 : index
    %c0_4 = arith.constant 0 : index
    %2 = vector.load %arg2[%c0_3, %c0_4] : memref<128x128xf32, #tpu.memory_space<vmem>>, vector<128x128xf32>
    %cst = arith.constant dense<0.000000e+00> : vector<8x128xf32>
    %3 = tpu.matmul %0, %2, %cst {dimension_numbers = #tpu.dot_dimension_numbers<[1], [0], [0], [1], [0, 0, 1, 1], [], []>} : vector<8x128xf32>, vector<128x128xf32>, vector<8x128xf32> -> vector<8x128xf32>
    %4 = vector.broadcast %1 : vector<1x128xf32> to vector<8x128xf32>
    %5 = arith.addf %3, %4 : vector<8x128xf32>
    %cst_5 = arith.constant 0.000000e+00 : f32
    %6 = vector.broadcast %cst_5 : f32 to vector<8x128xf32>
    %7 = arith.maximumf %5, %6 : vector<8x128xf32>
    %c0_6 = arith.constant 0 : index
    %c0_7 = arith.constant 0 : index
    %8 = vector.load %arg5[%c0_6, %c0_7] : memref<1x128xf32, #tpu.memory_space<vmem>>, vector<1x128xf32>
    %c0_8 = arith.constant 0 : index
    %c0_9 = arith.constant 0 : index
    %9 = vector.load %arg4[%c0_8, %c0_9] : memref<128x128xf32, #tpu.memory_space<vmem>>, vector<128x128xf32>
    %cst_10 = arith.constant dense<0.000000e+00> : vector<8x128xf32>
    %10 = tpu.matmul %7, %9, %cst_10 {dimension_numbers = #tpu.dot_dimension_numbers<[1], [0], [0], [1], [0, 0, 1, 1], [], []>} : vector<8x128xf32>, vector<128x128xf32>, vector<8x128xf32> -> vector<8x128xf32>
    %11 = vector.broadcast %8 : vector<1x128xf32> to vector<8x128xf32>
    %12 = arith.addf %10, %11 : vector<8x128xf32>
    %cst_11 = arith.constant 0.000000e+00 : f32
    %13 = vector.broadcast %cst_11 : f32 to vector<8x128xf32>
    %14 = arith.maximumf %12, %13 : vector<8x128xf32>
    %c0_12 = arith.constant 0 : index
    %c0_13 = arith.constant 0 : index
    %15 = vector.load %arg7[%c0_12, %c0_13] : memref<1x128xf32, #tpu.memory_space<vmem>>, vector<1x128xf32>
    %c0_14 = arith.constant 0 : index
    %c0_15 = arith.constant 0 : index
    %16 = vector.load %arg6[%c0_14, %c0_15] : memref<128x128xf32, #tpu.memory_space<vmem>>, vector<128x128xf32>
    %cst_16 = arith.constant dense<0.000000e+00> : vector<8x128xf32>
    %17 = tpu.matmul %14, %16, %cst_16 {dimension_numbers = #tpu.dot_dimension_numbers<[1], [0], [0], [1], [0, 0, 1, 1], [], []>} : vector<8x128xf32>, vector<128x128xf32>, vector<8x128xf32> -> vector<8x128xf32>
    %18 = vector.broadcast %15 : vector<1x128xf32> to vector<8x128xf32>
    %19 = arith.addf %17, %18 : vector<8x128xf32>
    %c0_17 = arith.constant 0 : index
    %c0_18 = arith.constant 0 : index
    %20 = vector.load %arg8[%c0_17, %c0_18] : memref<8x128xf32, #tpu.memory_space<vmem>>, vector<8x128xf32>
    tpu.vector_store %arg8[%c0_17, %c0_18], %19 {strides = array<i32>} : memref<8x128xf32, #tpu.memory_space<vmem>>, vector<8x128xf32>,
    return
  }
  func.func @transform_0(%arg0: i32) -> (i32, i32) {
    %c0_i32 = arith.constant 0 : i32
    %c0_i32_0 = arith.constant 0 : i32
    return %arg0, %c0_i32 : i32, i32
  }
  func.func @transform_1(%arg0: i32) -> (i32, i32) {
    %c0_i32 = arith.constant 0 : i32
    %c0_i32_0 = arith.constant 0 : i32
    %c0_i32_1 = arith.constant 0 : i32
    return %c0_i32, %c0_i32_0 : i32, i32
  }
  func.func @transform_2(%arg0: i32) -> (i32, i32) {
    %c0_i32 = arith.constant 0 : i32
    %c0_i32_0 = arith.constant 0 : i32
    %c0_i32_1 = arith.constant 0 : i32
    return %c0_i32, %c0_i32_0 : i32, i32
  }
  func.func @transform_3(%arg0: i32) -> (i32, i32) {
    %c0_i32 = arith.constant 0 : i32
    %c0_i32_0 = arith.constant 0 : i32
    %c0_i32_1 = arith.constant 0 : i32
    return %c0_i32, %c0_i32_0 : i32, i32
  }
  func.func @transform_4(%arg0: i32) -> (i32, i32) {
    %c0_i32 = arith.constant 0 : i32
    %c0_i32_0 = arith.constant 0 : i32
    %c0_i32_1 = arith.constant 0 : i32
    return %c0_i32, %c0_i32_0 : i32, i32
  }
  func.func @transform_5(%arg0: i32) -> (i32, i32) {
    %c0_i32 = arith.constant 0 : i32
    %c0_i32_0 = arith.constant 0 : i32
    %c0_i32_1 = arith.constant 0 : i32
    return %c0_i32, %c0_i32_0 : i32, i32
  }
  func.func @transform_6(%arg0: i32) -> (i32, i32) {
    %c0_i32 = arith.constant 0 : i32
    %c0_i32_0 = arith.constant 0 : i32
    %c0_i32_1 = arith.constant 0 : i32
    return %c0_i32, %c0_i32_0 : i32, i32
  }
  func.func @transform_7(%arg0: i32) -> (i32, i32) {
    %c0_i32 = arith.constant 0 : i32
    %c0_i32_0 = arith.constant 0 : i32
    return %arg0, %c0_i32 : i32, i32
  }
}

</mosaic_0001>

<llo_original>
// kernel: tpu_custom_call.1
$region0: #{tpu_custom_call.1}
  #allocation0 [shape = 'u32[]', space=smem, size = 0x4, offset = 0x4, fixed_abs, tag = 'smem constant byte address 0x4 - core index']
  #allocation1 [shape = 'u32[144,128]{1,0:T(1,128)}', space=vmem, size = 0x12000, scoped, tag = 'internal scratch']
  %s0 = inlined_call_operand.hbm [shape: f32[8,128], index: 0, kind: input, shape index: {}]
  %s1 = inlined_call_operand.hbm [shape: f32[128,128], index: 1, kind: input, shape index: {}]
  %s2 = inlined_call_operand.vmem [shape: f32[1,128], index: 2, kind: input, shape index: {}]
  %s3 = inlined_call_operand.hbm [shape: f32[128,128], index: 3, kind: input, shape index: {}]
  %s4 = inlined_call_operand.vmem [shape: f32[1,128], index: 4, kind: input, shape index: {}]
  %s5 = inlined_call_operand.hbm [shape: f32[128,128], index: 5, kind: input, shape index: {}]
  %s6 = inlined_call_operand.vmem [shape: f32[1,128], index: 6, kind: input, shape index: {}]
  %s7 = inlined_call_operand.hbm [shape: f32[8,128], index: 7, kind: output, shape index: {}]
  %s8 = sld [smem:[#allocation0]]
  $region54: #{tpu_custom_call.1} parent=0
    _
  %s10 = ssub.s32 1, %s8
  %s11 = scalar_select 0, %s10, %s8
  $region1: #{tpu_custom_call.1} parent=0
    #allocation2 [shape = 'u8[4096]{0}', space=vmem, size = 0x1000, scoped, tag = 'input window, operand 0, single buffered']
    #allocation3 [shape = 's32[1]{0}', space=sflag, size = 0x4, scoped, tag = 'scoped memory for tpu_custom_call.1']
    #allocation4 [shape = 's32[1]{0}', space=sflag, size = 0x4, scoped, tag = 'scoped memory for tpu_custom_call.1']
    #allocation5 [shape = 'u8[65536]{0}', space=vmem, size = 0x10000, scoped, tag = 'input window, operand 1, single buffered']
    #allocation6 [shape = 's32[1]{0}', space=sflag, size = 0x4, scoped, tag = 'scoped memory for tpu_custom_call.1']
    #allocation7 [shape = 'u8[65536]{0}', space=vmem, size = 0x10000, scoped, tag = 'input window, operand 3, single buffered']
    #allocation8 [shape = 'u8[65536]{0}', space=vmem, size = 0x10000, scoped, tag = 'input window, operand 5, single buffered']
    #allocation9 [shape = 's32[1]{0}', space=sflag, size = 0x4, scoped, tag = 'scoped memory for tpu_custom_call.1']
    #allocation10 [shape = 'u8[4096]{0}', space=vmem, size = 0x1000, scoped, tag = 'output window, operand 0, single buffered']
    %12 = vsyncpa [#allocation3], 0
    %13 = vsyncpa [#allocation6], 0
    %14 = vsyncpa [#allocation9], 0
    %15 = vsyncpa [#allocation4], 0
    // Predicated region
    $region2: #{tpu_custom_call.1} parent=1 // pred_check
      _
    $region3: #{tpu_custom_call.1} parent=1 // pred_check_branch
      %17 = sbr.rel (0) target = $region5
    $region4: #{tpu_custom_call.1} parent=1 // pred_region
      %s19 = ssub.s32 128, 128
      %20 = vsyncadd [#allocation3], %s19
      %s22 = sshll.u32 [#allocation2], 4
      %s23 = int_to_ptr.vmem [resolvable:$true] %s22
      %25 = dma.hbm_to_vmem [thread:$0]  %s0, 128, %s23, [#allocation3]
    $region5: #{tpu_custom_call.1} parent=1 // pred_fallthru
      _
    // Predicated region
    $region6: #{tpu_custom_call.1} parent=1 // pred_check
      _
    $region7: #{tpu_custom_call.1} parent=1 // pred_check_branch
      %27 = sbr.rel (0) target = $region9
    $region8: #{tpu_custom_call.1} parent=1 // pred_region
      %s29 = ssub.s32 2048, 2048
      %30 = vsyncadd [#allocation6], %s29
      %s31 = sshll.u32 [#allocation5], 4
      %s32 = int_to_ptr.vmem [resolvable:$true] %s31
      %37 = dma.hbm_to_vmem [thread:$0]  %s1, 2048, %s32, [#allocation6], 128, 128, 8
    $region9: #{tpu_custom_call.1} parent=1 // pred_fallthru
      _
    // Predicated region
    $region10: #{tpu_custom_call.1} parent=1 // pred_check
      _
    $region11: #{tpu_custom_call.1} parent=1 // pred_check_branch
      %39 = sbr.rel (0) target = $region13
    $region12: #{tpu_custom_call.1} parent=1 // pred_region
      _
    $region13: #{tpu_custom_call.1} parent=1 // pred_fallthru
      _
    // Predicated region
    $region14: #{tpu_custom_call.1} parent=1 // pred_check
      _
    $region15: #{tpu_custom_call.1} parent=1 // pred_check_branch
      %41 = sbr.rel (0) target = $region17
    $region16: #{tpu_custom_call.1} parent=1 // pred_region
      %s43 = ssub.s32 2048, 2048
      %44 = vsyncadd [#allocation6], %s43
      %s45 = sshll.u32 [#allocation7], 4
      %s46 = int_to_ptr.vmem [resolvable:$true] %s45
      %51 = dma.hbm_to_vmem [thread:$0]  %s3, 2048, %s46, [#allocation6], 128, 128, 8
    $region17: #{tpu_custom_call.1} parent=1 // pred_fallthru
      _
    // Predicated region
    $region18: #{tpu_custom_call.1} parent=1 // pred_check
      _
    $region19: #{tpu_custom_call.1} parent=1 // pred_check_branch
      %53 = sbr.rel (0) target = $region21
    $region20: #{tpu_custom_call.1} parent=1 // pred_region
      _
    $region21: #{tpu_custom_call.1} parent=1 // pred_fallthru
      _
    // Predicated region
    $region22: #{tpu_custom_call.1} parent=1 // pred_check
      _
    $region23: #{tpu_custom_call.1} parent=1 // pred_check_branch
      %55 = sbr.rel (0) target = $region25
    $region24: #{tpu_custom_call.1} parent=1 // pred_region
      %s57 = ssub.s32 2048, 2048
      %58 = vsyncadd [#allocation9], %s57
      %s59 = sshll.u32 [#allocation8], 4
      %s60 = int_to_ptr.vmem [resolvable:$true] %s59
      %65 = dma.hbm_to_vmem [thread:$0]  %s5, 2048, %s60, [#allocation9], 128, 128, 8
    $region25: #{tpu_custom_call.1} parent=1 // pred_fallthru
      _
    // Predicated region
    $region26: #{tpu_custom_call.1} parent=1 // pred_check
      _
    $region27: #{tpu_custom_call.1} parent=1 // pred_check_branch
      %67 = sbr.rel (0) target = $region29
    $region28: #{tpu_custom_call.1} parent=1 // pred_region
      _
    $region29: #{tpu_custom_call.1} parent=1 // pred_fallthru
      _
    // Predicated region
    $region30: #{tpu_custom_call.1} parent=1 // pred_check
      _
    $region31: #{tpu_custom_call.1} parent=1 // pred_check_branch
      %69 = sbr.rel (0) target = $region33
    $region32: #{tpu_custom_call.1} parent=1 // pred_region
      %70 = dma.done [#allocation3], 128
    $region33: #{tpu_custom_call.1} parent=1 // pred_fallthru
      _
    // Predicated region
    $region34: #{tpu_custom_call.1} parent=1 // pred_check
      _
    $region35: #{tpu_custom_call.1} parent=1 // pred_check_branch
      %72 = sbr.rel (0) target = $region37
    $region36: #{tpu_custom_call.1} parent=1 // pred_region
      %73 = dma.done [#allocation6], 2048
    $region37: #{tpu_custom_call.1} parent=1 // pred_fallthru
      _
    // Predicated region
    $region38: #{tpu_custom_call.1} parent=1 // pred_check
      _
    $region39: #{tpu_custom_call.1} parent=1 // pred_check_branch
      %75 = sbr.rel (0) target = $region41
    $region40: #{tpu_custom_call.1} parent=1 // pred_region
      %76 = dma.done [#allocation6], 2048
    $region41: #{tpu_custom_call.1} parent=1 // pred_fallthru
      _
    // Predicated region
    $region42: #{tpu_custom_call.1} parent=1 // pred_check
      _
    $region43: #{tpu_custom_call.1} parent=1 // pred_check_branch
      %78 = sbr.rel (0) target = $region45
    $region44: #{tpu_custom_call.1} parent=1 // pred_region
      %79 = dma.done [#allocation9], 2048
    $region45: #{tpu_custom_call.1} parent=1 // pred_fallthru
      _
    %v80 = vld [vmem:[#allocation2] sm:$0xff]
    %v81 = vld [vmem:[%s2] sm:$0x1]
    %v82 = vld [vmem:[#allocation5] sm:$0xff]
    %v83 = vld [vmem:[#allocation5 + $0x8] sm:$0xff]
    %v84 = vld [vmem:[#allocation5 + $0x10] sm:$0xff]
    %v85 = vld [vmem:[#allocation5 + $0x18] sm:$0xff]
    %v86 = vld [vmem:[#allocation5 + $0x20] sm:$0xff]
    %v87 = vld [vmem:[#allocation5 + $0x28] sm:$0xff]
    %v88 = vld [vmem:[#allocation5 + $0x30] sm:$0xff]
    %v89 = vld [vmem:[#allocation5 + $0x38] sm:$0xff]
    %v90 = vld [vmem:[#allocation5 + $0x40] sm:$0xff]
    %v91 = vld [vmem:[#allocation5 + $0x48] sm:$0xff]
    %v92 = vld [vmem:[#allocation5 + $0x50] sm:$0xff]
    %v93 = vld [vmem:[#allocation5 + $0x58] sm:$0xff]
    %v94 = vld [vmem:[#allocation5 + $0x60] sm:$0xff]
    %v95 = vld [vmem:[#allocation5 + $0x68] sm:$0xff]
    %v96 = vld [vmem:[#allocation5 + $0x70] sm:$0xff]
    %v97 = vld [vmem:[#allocation5 + $0x78] sm:$0xff]
    %v99 = vlaneseq
    %v100 = vshrl.u32 %v99, 7
    %v101 = vsub.s32 0, %v100
    %v102 = vrot.slane %v81, %v101
    %104 = vmatprep.subr.mxu0 0.0
    %105 = vmatpush1.msra.mxu0 %v82
    %106 = vmatprep.subr.mxu0 0.0
    %107 = vmatpush1.msra.mxu0 %v83
    %108 = vmatprep.subr.mxu0 0.0
    %109 = vmatpush1.msra.mxu0 %v84
    %110 = vmatprep.subr.mxu0 0.0
    %111 = vmatpush1.msra.mxu0 %v85
    %112 = vmatprep.subr.mxu0 0.0
    %113 = vmatpush1.msra.mxu0 %v86
    %114 = vmatprep.subr.mxu0 0.0
    %115 = vmatpush1.msra.mxu0 %v87
    %116 = vmatprep.subr.mxu0 0.0
    %117 = vmatpush1.msra.mxu0 %v88
    %118 = vmatprep.subr.mxu0 0.0
    %119 = vmatpush1.msra.mxu0 %v89
    %120 = vmatprep.subr.mxu0 0.0
    %121 = vmatpush1.msra.mxu0 %v90
    %122 = vmatprep.subr.mxu0 0.0
    %123 = vmatpush1.msra.mxu0 %v91
    %124 = vmatprep.subr.mxu0 0.0
    %125 = vmatpush1.msra.mxu0 %v92
    %126 = vmatprep.subr.mxu0 0.0
    %127 = vmatpush1.msra.mxu0 %v93
    %128 = vmatprep.subr.mxu0 0.0
    %129 = vmatpush1.msra.mxu0 %v94
    %130 = vmatprep.subr.mxu0 0.0
    %131 = vmatpush1.msra.mxu0 %v95
    %132 = vmatprep.subr.mxu0 0.0
    %133 = vmatpush1.msra.mxu0 %v96
    %134 = vmatprep.subr.mxu0 0.0
    %135 = vmatpush1.msra.mxu0 %v97
    %136 = vmatprep.subr.mxu0 0.0
    %137 = vmatpush1.msra.mxu0 0.0
    %138 = vmatprep.subr.mxu0 0.0
    %139 = vmatpush1.msra.mxu0 0.0
    %140 = vmatprep.subr.mxu0 0.0
    %141 = vmatpush1.msra.mxu0 0.0
    %142 = vmatprep.subr.mxu0 0.0
    %143 = vmatpush1.msra.mxu0 0.0
    %144 = vmatprep.subr.mxu0 0.0
    %145 = vmatpush1.msra.mxu0 0.0
    %146 = vmatprep.subr.mxu0 0.0
    %147 = vmatpush1.msra.mxu0 0.0
    %148 = vmatprep.subr.mxu0 0.0
    %149 = vmatpush1.msra.mxu0 0.0
    %150 = vmatprep.subr.mxu0 0.0
    %151 = vmatpush1.msra.mxu0 0.0
    %152 = vmatprep.subr.mxu0 0.0
    %153 = vmatpush1.msra.mxu0 0.0
    %154 = vmatprep.subr.mxu0 0.0
    %155 = vmatpush1.msra.mxu0 0.0
    %156 = vmatprep.subr.mxu0 0.0
    %157 = vmatpush1.msra.mxu0 0.0
    %158 = vmatprep.subr.mxu0 0.0
    %159 = vmatpush1.msra.mxu0 0.0
    %160 = vmatprep.subr.mxu0 0.0
    %161 = vmatpush1.msra.mxu0 0.0
    %162 = vmatprep.subr.mxu0 0.0
    %163 = vmatpush1.msra.mxu0 0.0
    %164 = vmatprep.subr.mxu0 0.0
    %165 = vmatpush1.msra.mxu0 0.0
    %166 = vmatprep.subr.mxu0 0.0
    %167 = vmatpush1.msra.mxu0 0.0
    %168 = vmatprep.mubr.f32.mxu0 0.0
    %169 = vmatmul.mubr.f32.gmra.mrb[0].mxu0 %v80
    %v170 = vpop.f32.mrb[0].mxu0
    %v171 = vadd.f32 %v102, %v170
    %v172 = vpop.f32.mrb[0].mxu0
    %173 = vdwg.mxu0
    %v174 = vmax.f32 %v171, 0.0
    %v175 = vld [vmem:[%s4] sm:$0x1]
    %v176 = vld [vmem:[#allocation7] sm:$0xff]
    %v177 = vld [vmem:[#allocation7 + $0x8] sm:$0xff]
    %v178 = vld [vmem:[#allocation7 + $0x10] sm:$0xff]
    %v179 = vld [vmem:[#allocation7 + $0x18] sm:$0xff]
    %v180 = vld [vmem:[#allocation7 + $0x20] sm:$0xff]
    %v181 = vld [vmem:[#allocation7 + $0x28] sm:$0xff]
    %v182 = vld [vmem:[#allocation7 + $0x30] sm:$0xff]
    %v183 = vld [vmem:[#allocation7 + $0x38] sm:$0xff]
    %v184 = vld [vmem:[#allocation7 + $0x40] sm:$0xff]
    %v185 = vld [vmem:[#allocation7 + $0x48] sm:$0xff]
    %v186 = vld [vmem:[#allocation7 + $0x50] sm:$0xff]
    %v187 = vld [vmem:[#allocation7 + $0x58] sm:$0xff]
    %v188 = vld [vmem:[#allocation7 + $0x60] sm:$0xff]
    %v189 = vld [vmem:[#allocation7 + $0x68] sm:$0xff]
    %v190 = vld [vmem:[#allocation7 + $0x70] sm:$0xff]
    %v191 = vld [vmem:[#allocation7 + $0x78] sm:$0xff]
    %v193 = vlaneseq
    %v194 = vshrl.u32 %v193, 7
    %v195 = vsub.s32 0, %v194
    %v196 = vrot.slane %v175, %v195
    %198 = vmatprep.subr.mxu0 0.0
    %199 = vmatpush1.msra.mxu0 %v176
    %200 = vmatprep.subr.mxu0 0.0
    %201 = vmatpush1.msra.mxu0 %v177
    %202 = vmatprep.subr.mxu0 0.0
    %203 = vmatpush1.msra.mxu0 %v178
    %204 = vmatprep.subr.mxu0 0.0
    %205 = vmatpush1.msra.mxu0 %v179
    %206 = vmatprep.subr.mxu0 0.0
    %207 = vmatpush1.msra.mxu0 %v180
    %208 = vmatprep.subr.mxu0 0.0
    %209 = vmatpush1.msra.mxu0 %v181
    %210 = vmatprep.subr.mxu0 0.0
    %211 = vmatpush1.msra.mxu0 %v182
    %212 = vmatprep.subr.mxu0 0.0
    %213 = vmatpush1.msra.mxu0 %v183
    %214 = vmatprep.subr.mxu0 0.0
    %215 = vmatpush1.msra.mxu0 %v184
    %216 = vmatprep.subr.mxu0 0.0
    %217 = vmatpush1.msra.mxu0 %v185
    %218 = vmatprep.subr.mxu0 0.0
    %219 = vmatpush1.msra.mxu0 %v186
    %220 = vmatprep.subr.mxu0 0.0
    %221 = vmatpush1.msra.mxu0 %v187
    %222 = vmatprep.subr.mxu0 0.0
    %223 = vmatpush1.msra.mxu0 %v188
    %224 = vmatprep.subr.mxu0 0.0
    %225 = vmatpush1.msra.mxu0 %v189
    %226 = vmatprep.subr.mxu0 0.0
    %227 = vmatpush1.msra.mxu0 %v190
    %228 = vmatprep.subr.mxu0 0.0
    %229 = vmatpush1.msra.mxu0 %v191
    %230 = vmatprep.subr.mxu0 0.0
    %231 = vmatpush1.msra.mxu0 0.0
    %232 = vmatprep.subr.mxu0 0.0
    %233 = vmatpush1.msra.mxu0 0.0
    %234 = vmatprep.subr.mxu0 0.0
    %235 = vmatpush1.msra.mxu0 0.0
    %236 = vmatprep.subr.mxu0 0.0
    %237 = vmatpush1.msra.mxu0 0.0
    %238 = vmatprep.subr.mxu0 0.0
    %239 = vmatpush1.msra.mxu0 0.0
    %240 = vmatprep.subr.mxu0 0.0
    %241 = vmatpush1.msra.mxu0 0.0
    %242 = vmatprep.subr.mxu0 0.0
    %243 = vmatpush1.msra.mxu0 0.0
    %244 = vmatprep.subr.mxu0 0.0
    %245 = vmatpush1.msra.mxu0 0.0
    %246 = vmatprep.subr.mxu0 0.0
    %247 = vmatpush1.msra.mxu0 0.0
    %248 = vmatprep.subr.mxu0 0.0
    %249 = vmatpush1.msra.mxu0 0.0
    %250 = vmatprep.subr.mxu0 0.0
    %251 = vmatpush1.msra.mxu0 0.0
    %252 = vmatprep.subr.mxu0 0.0
    %253 = vmatpush1.msra.mxu0 0.0
    %254 = vmatprep.subr.mxu0 0.0
    %255 = vmatpush1.msra.mxu0 0.0
    %256 = vmatprep.subr.mxu0 0.0
    %257 = vmatpush1.msra.mxu0 0.0
    %258 = vmatprep.subr.mxu0 0.0
    %259 = vmatpush1.msra.mxu0 0.0
    %260 = vmatprep.subr.mxu0 0.0
    %261 = vmatpush1.msra.mxu0 0.0
    %262 = vmatprep.mubr.f32.mxu0 0.0
    %263 = vmatmul.mubr.f32.gmra.mrb[0].mxu0 %v174
    %v264 = vpop.f32.mrb[0].mxu0
    %v265 = vadd.f32 %v196, %v264
    %v266 = vpop.f32.mrb[0].mxu0
    %267 = vdwg.mxu0
    %v268 = vmax.f32 %v265, 0.0
    %v269 = vld [vmem:[%s6] sm:$0x1]
    %v270 = vld [vmem:[#allocation8] sm:$0xff]
    %v271 = vld [vmem:[#allocation8 + $0x8] sm:$0xff]
    %v272 = vld [vmem:[#allocation8 + $0x10] sm:$0xff]
    %v273 = vld [vmem:[#allocation8 + $0x18] sm:$0xff]
    %v274 = vld [vmem:[#allocation8 + $0x20] sm:$0xff]
    %v275 = vld [vmem:[#allocation8 + $0x28] sm:$0xff]
    %v276 = vld [vmem:[#allocation8 + $0x30] sm:$0xff]
    %v277 = vld [vmem:[#allocation8 + $0x38] sm:$0xff]
    %v278 = vld [vmem:[#allocation8 + $0x40] sm:$0xff]
    %v279 = vld [vmem:[#allocation8 + $0x48] sm:$0xff]
    %v280 = vld [vmem:[#allocation8 + $0x50] sm:$0xff]
    %v281 = vld [vmem:[#allocation8 + $0x58] sm:$0xff]
    %v282 = vld [vmem:[#allocation8 + $0x60] sm:$0xff]
    %v283 = vld [vmem:[#allocation8 + $0x68] sm:$0xff]
    %v284 = vld [vmem:[#allocation8 + $0x70] sm:$0xff]
    %v285 = vld [vmem:[#allocation8 + $0x78] sm:$0xff]
    %v287 = vlaneseq
    %v288 = vshrl.u32 %v287, 7
    %v289 = vsub.s32 0, %v288
    %v290 = vrot.slane %v269, %v289
    %292 = vmatprep.subr.mxu0 0.0
    %293 = vmatpush1.msra.mxu0 %v270
    %294 = vmatprep.subr.mxu0 0.0
    %295 = vmatpush1.msra.mxu0 %v271
    %296 = vmatprep.subr.mxu0 0.0
    %297 = vmatpush1.msra.mxu0 %v272
    %298 = vmatprep.subr.mxu0 0.0
    %299 = vmatpush1.msra.mxu0 %v273
    %300 = vmatprep.subr.mxu0 0.0
    %301 = vmatpush1.msra.mxu0 %v274
    %302 = vmatprep.subr.mxu0 0.0
    %303 = vmatpush1.msra.mxu0 %v275
    %304 = vmatprep.subr.mxu0 0.0
    %305 = vmatpush1.msra.mxu0 %v276
    %306 = vmatprep.subr.mxu0 0.0
    %307 = vmatpush1.msra.mxu0 %v277
    %308 = vmatprep.subr.mxu0 0.0
    %309 = vmatpush1.msra.mxu0 %v278
    %310 = vmatprep.subr.mxu0 0.0
    %311 = vmatpush1.msra.mxu0 %v279
    %312 = vmatprep.subr.mxu0 0.0
    %313 = vmatpush1.msra.mxu0 %v280
    %314 = vmatprep.subr.mxu0 0.0
    %315 = vmatpush1.msra.mxu0 %v281
    %316 = vmatprep.subr.mxu0 0.0
    %317 = vmatpush1.msra.mxu0 %v282
    %318 = vmatprep.subr.mxu0 0.0
    %319 = vmatpush1.msra.mxu0 %v283
    %320 = vmatprep.subr.mxu0 0.0
    %321 = vmatpush1.msra.mxu0 %v284
    %322 = vmatprep.subr.mxu0 0.0
    %323 = vmatpush1.msra.mxu0 %v285
    %324 = vmatprep.subr.mxu0 0.0
    %325 = vmatpush1.msra.mxu0 0.0
    %326 = vmatprep.subr.mxu0 0.0
    %327 = vmatpush1.msra.mxu0 0.0
    %328 = vmatprep.subr.mxu0 0.0
    %329 = vmatpush1.msra.mxu0 0.0
    %330 = vmatprep.subr.mxu0 0.0
    %331 = vmatpush1.msra.mxu0 0.0
    %332 = vmatprep.subr.mxu0 0.0
    %333 = vmatpush1.msra.mxu0 0.0
    %334 = vmatprep.subr.mxu0 0.0
    %335 = vmatpush1.msra.mxu0 0.0
    %336 = vmatprep.subr.mxu0 0.0
    %337 = vmatpush1.msra.mxu0 0.0
    %338 = vmatprep.subr.mxu0 0.0
    %339 = vmatpush1.msra.mxu0 0.0
    %340 = vmatprep.subr.mxu0 0.0
    %341 = vmatpush1.msra.mxu0 0.0
    %342 = vmatprep.subr.mxu0 0.0
    %343 = vmatpush1.msra.mxu0 0.0
    %344 = vmatprep.subr.mxu0 0.0
    %345 = vmatpush1.msra.mxu0 0.0
    %346 = vmatprep.subr.mxu0 0.0
    %347 = vmatpush1.msra.mxu0 0.0
    %348 = vmatprep.subr.mxu0 0.0
    %349 = vmatpush1.msra.mxu0 0.0
    %350 = vmatprep.subr.mxu0 0.0
    %351 = vmatpush1.msra.mxu0 0.0
    %352 = vmatprep.subr.mxu0 0.0
    %353 = vmatpush1.msra.mxu0 0.0
    %354 = vmatprep.subr.mxu0 0.0
    %355 = vmatpush1.msra.mxu0 0.0
    %356 = vmatprep.mubr.f32.mxu0 0.0
    %357 = vmatmul.mubr.f32.gmra.mrb[0].mxu0 %v268
    %v358 = vpop.f32.mrb[0].mxu0
    %v359 = vadd.f32 %v290, %v358
    %v360 = vpop.f32.mrb[0].mxu0
    %361 = vdwg.mxu0
    %362 = vst [vmem:[#allocation10] sm:$0xff] %v359
    // Predicated region
    $region46: #{tpu_custom_call.1} parent=1 // pred_check
      _
    $region47: #{tpu_custom_call.1} parent=1 // pred_check_branch
      %364 = sbr.rel (0) target = $region49
    $region48: #{tpu_custom_call.1} parent=1 // pred_region
      %s366 = ssub.s32 128, 128
      %367 = vsyncadd [#allocation4], %s366
      %s369 = sshll.u32 [#allocation10], 4
      %s370 = int_to_ptr.vmem [resolvable:$true] %s369
      %372 = dma.vmem_to_hbm [thread:$0]  %s370, 128, %s7, [#allocation4]
    $region49: #{tpu_custom_call.1} parent=1 // pred_fallthru
      _
    // Predicated region
    $region50: #{tpu_custom_call.1} parent=1 // pred_check
      _
    $region51: #{tpu_custom_call.1} parent=1 // pred_check_branch
      %374 = sbr.rel (0) target = $region53
    $region52: #{tpu_custom_call.1} parent=1 // pred_region
      %375 = dma.done [#allocation4], 128
    $region53: #{tpu_custom_call.1} parent=1 // pred_fallthru
      _
    %376 = vsyncpa [#allocation3], 1
    %377 = vsyncpa [#allocation6], 1
    %378 = vsyncpa [#allocation9], 1
    %379 = vsyncpa [#allocation4], 1

// kernel: tpu_custom_call.1
$region0: #{tpu_custom_call.1}
  #allocation0 [shape = 'u32[]', space=smem, size = 0x4, offset = 0x4, fixed_abs, tag = 'smem constant byte address 0x4 - core index']
  #allocation1 [shape = 'u32[144,128]{1,0:T(1,128)}', space=vmem, size = 0x12000, scoped, tag = 'internal scratch']
  %s0 = inlined_call_operand.hbm [shape: f32[8,128], index: 0, kind: input, shape index: {}]
  %s1 = inlined_call_operand.hbm [shape: f32[128,128], index: 1, kind: input, shape index: {}]
  %s2 = inlined_call_operand.vmem [shape: f32[1,128], index: 2, kind: input, shape index: {}]
  %s3 = inlined_call_operand.hbm [shape: f32[128,128], index: 3, kind: input, shape index: {}]
  %s4 = inlined_call_operand.vmem [shape: f32[1,128], index: 4, kind: input, shape index: {}]
  %s5 = inlined_call_operand.hbm [shape: f32[128,128], index: 5, kind: input, shape index: {}]
  %s6 = inlined_call_operand.vmem [shape: f32[1,128], index: 6, kind: input, shape index: {}]
  %s7 = inlined_call_operand.hbm [shape: f32[8,128], index: 7, kind: output, shape index: {}]
  %s8 = sld [smem:[#allocation0]]
  $region54: #{tpu_custom_call.1} parent=0
    _
  %s10 = ssub.s32 1, %s8
  %s11 = scalar_select 0, %s10, %s8
  $region1: #{tpu_custom_call.1} parent=0
    #allocation2 [shape = 'u8[4096]{0}', space=vmem, size = 0x1000, scoped, tag = 'input window, operand 0, single buffered']
    #allocation3 [shape = 's32[1]{0}', space=sflag, size = 0x4, scoped, tag = 'scoped memory for tpu_custom_call.1']
    #allocation4 [shape = 's32[1]{0}', space=sflag, size = 0x4, scoped, tag = 'scoped memory for tpu_custom_call.1']
    #allocation5 [shape = 'u8[65536]{0}', space=vmem, size = 0x10000, scoped, tag = 'input window, operand 1, single buffered']
    #allocation6 [shape = 's32[1]{0}', space=sflag, size = 0x4, scoped, tag = 'scoped memory for tpu_custom_call.1']
    #allocation7 [shape = 'u8[65536]{0}', space=vmem, size = 0x10000, scoped, tag = 'input window, operand 3, single buffered']
    #allocation8 [shape = 'u8[65536]{0}', space=vmem, size = 0x10000, scoped, tag = 'input window, operand 5, single buffered']
    #allocation9 [shape = 's32[1]{0}', space=sflag, size = 0x4, scoped, tag = 'scoped memory for tpu_custom_call.1']
    #allocation10 [shape = 'u8[4096]{0}', space=vmem, size = 0x1000, scoped, tag = 'output window, operand 0, single buffered']
    %12 = vsyncpa [#allocation3], 0
    %13 = vsyncpa [#allocation6], 0
    %14 = vsyncpa [#allocation9], 0
    %15 = vsyncpa [#allocation4], 0
    // Predicated region
    $region2: #{tpu_custom_call.1} parent=1 // pred_check
      _
    $region3: #{tpu_custom_call.1} parent=1 // pred_check_branch
      %17 = sbr.rel (0) target = $region5
    $region4: #{tpu_custom_call.1} parent=1 // pred_region
      %s19 = ssub.s32 128, 128
      %20 = vsyncadd [#allocation3], %s19
      %s22 = sshll.u32 [#allocation2], 4
      %s23 = int_to_ptr.vmem [resolvable:$true] %s22
      %25 = dma.hbm_to_vmem [thread:$0]  %s0, 128, %s23, [#allocation3]
    $region5: #{tpu_custom_call.1} parent=1 // pred_fallthru
      _
    // Predicated region
    $region6: #{tpu_custom_call.1} parent=1 // pred_check
      _
    $region7: #{tpu_custom_call.1} parent=1 // pred_check_branch
      %27 = sbr.rel (0) target = $region9
    $region8: #{tpu_custom_call.1} parent=1 // pred_region
      %s29 = ssub.s32 2048, 2048
      %30 = vsyncadd [#allocation6], %s29
      %s31 = sshll.u32 [#allocation5], 4
      %s32 = int_to_ptr.vmem [resolvable:$true] %s31
      %37 = dma.hbm_to_vmem [thread:$0]  %s1, 2048, %s32, [#allocation6], 128, 128, 8
    $region9: #{tpu_custom_call.1} parent=1 // pred_fallthru
      _
    // Predicated region
    $region10: #{tpu_custom_call.1} parent=1 // pred_check
      _
    $region11: #{tpu_custom_call.1} parent=1 // pred_check_branch
      %39 = sbr.rel (0) target = $region13
    $region12: #{tpu_custom_call.1} parent=1 // pred_region
      _
    $region13: #{tpu_custom_call.1} parent=1 // pred_fallthru
      _
    // Predicated region
    $region14: #{tpu_custom_call.1} parent=1 // pred_check
      _
    $region15: #{tpu_custom_call.1} parent=1 // pred_check_branch
      %41 = sbr.rel (0) target = $region17
    $region16: #{tpu_custom_call.1} parent=1 // pred_region
      %s43 = ssub.s32 2048, 2048
      %44 = vsyncadd [#allocation6], %s43
      %s45 = sshll.u32 [#allocation7], 4
      %s46 = int_to_ptr.vmem [resolvable:$true] %s45
      %51 = dma.hbm_to_vmem [thread:$0]  %s3, 2048, %s46, [#allocation6], 128, 128, 8
    $region17: #{tpu_custom_call.1} parent=1 // pred_fallthru
      _
    // Predicated region
    $region18: #{tpu_custom_call.1} parent=1 // pred_check
      _
    $region19: #{tpu_custom_call.1} parent=1 // pred_check_branch
      %53 = sbr.rel (0) target = $region21
    $region20: #{tpu_custom_call.1} parent=1 // pred_region
      _
    $region21: #{tpu_custom_call.1} parent=1 // pred_fallthru
      _
    // Predicated region
    $region22: #{tpu_custom_call.1} parent=1 // pred_check
      _
    $region23: #{tpu_custom_call.1} parent=1 // pred_check_branch
      %55 = sbr.rel (0) target = $region25
    $region24: #{tpu_custom_call.1} parent=1 // pred_region
      %s57 = ssub.s32 2048, 2048
      %58 = vsyncadd [#allocation9], %s57
      %s59 = sshll.u32 [#allocation8], 4
      %s60 = int_to_ptr.vmem [resolvable:$true] %s59
      %65 = dma.hbm_to_vmem [thread:$0]  %s5, 2048, %s60, [#allocation9], 128, 128, 8
    $region25: #{tpu_custom_call.1} parent=1 // pred_fallthru
      _
    // Predicated region
    $region26: #{tpu_custom_call.1} parent=1 // pred_check
      _
    $region27: #{tpu_custom_call.1} parent=1 // pred_check_branch
      %67 = sbr.rel (0) target = $region29
    $region28: #{tpu_custom_call.1} parent=1 // pred_region
      _
    $region29: #{tpu_custom_call.1} parent=1 // pred_fallthru
      _
    // Predicated region
    $region30: #{tpu_custom_call.1} parent=1 // pred_check
      _
    $region31: #{tpu_custom_call.1} parent=1 // pred_check_branch
      %69 = sbr.rel (0) target = $region33
    $region32: #{tpu_custom_call.1} parent=1 // pred_region
      %70 = dma.done [#allocation3], 128
    $region33: #{tpu_custom_call.1} parent=1 // pred_fallthru
      _
    // Predicated region
    $region34: #{tpu_custom_call.1} parent=1 // pred_check
      _
    $region35: #{tpu_custom_call.1} parent=1 // pred_check_branch
      %72 = sbr.rel (0) target = $region37
    $region36: #{tpu_custom_call.1} parent=1 // pred_region
      %73 = dma.done [#allocation6], 2048
    $region37: #{tpu_custom_call.1} parent=1 // pred_fallthru
      _
    // Predicated region
    $region38: #{tpu_custom_call.1} parent=1 // pred_check
      _
    $region39: #{tpu_custom_call.1} parent=1 // pred_check_branch
      %75 = sbr.rel (0) target = $region41
    $region40: #{tpu_custom_call.1} parent=1 // pred_region
      %76 = dma.done [#allocation6], 2048
    $region41: #{tpu_custom_call.1} parent=1 // pred_fallthru
      _
    // Predicated region
    $region42: #{tpu_custom_call.1} parent=1 // pred_check
      _
    $region43: #{tpu_custom_call.1} parent=1 // pred_check_branch
      %78 = sbr.rel (0) target = $region45
    $region44: #{tpu_custom_call.1} parent=1 // pred_region
      %79 = dma.done [#allocation9], 2048
    $region45: #{tpu_custom_call.1} parent=1 // pred_fallthru
      _
    %v80 = vld [vmem:[#allocation2] sm:$0xff]
    %v81 = vld [vmem:[%s2] sm:$0x1]
    %v82 = vld [vmem:[#allocation5] sm:$0xff]
    %v83 = vld [vmem:[#allocation5 + $0x8] sm:$0xff]
    %v84 = vld [vmem:[#allocation5 + $0x10] sm:$0xff]
    %v85 = vld [vmem:[#allocation5 + $0x18] sm:$0xff]
    %v86 = vld [vmem:[#allocation5 + $0x20] sm:$0xff]
    %v87 = vld [vmem:[#allocation5 + $0x28] sm:$0xff]
    %v88 = vld [vmem:[#allocation5 + $0x30] sm:$0xff]
    %v89 = vld [vmem:[#allocation5 + $0x38] sm:$0xff]
    %v90 = vld [vmem:[#allocation5 + $0x40] sm:$0xff]
    %v91 = vld [vmem:[#allocation5 + $0x48] sm:$0xff]
    %v92 = vld [vmem:[#allocation5 + $0x50] sm:$0xff]
    %v93 = vld [vmem:[#allocation5 + $0x58] sm:$0xff]
    %v94 = vld [vmem:[#allocation5 + $0x60] sm:$0xff]
    %v95 = vld [vmem:[#allocation5 + $0x68] sm:$0xff]
    %v96 = vld [vmem:[#allocation5 + $0x70] sm:$0xff]
    %v97 = vld [vmem:[#allocation5 + $0x78] sm:$0xff]
    %v99 = vlaneseq
    %v100 = vshrl.u32 %v99, 7
    %v101 = vsub.s32 0, %v100
    %v102 = vrot.slane %v81, %v101
    %104 = vmatprep.subr.mxu0 0.0
    %105 = vmatpush1.msra.mxu0 %v82
    %106 = vmatprep.subr.mxu0 0.0
    %107 = vmatpush1.msra.mxu0 %v83
    %108 = vmatprep.subr.mxu0 0.0
    %109 = vmatpush1.msra.mxu0 %v84
    %110 = vmatprep.subr.mxu0 0.0
    %111 = vmatpush1.msra.mxu0 %v85
    %112 = vmatprep.subr.mxu0 0.0
    %113 = vmatpush1.msra.mxu0 %v86
    %114 = vmatprep.subr.mxu0 0.0
    %115 = vmatpush1.msra.mxu0 %v87
    %116 = vmatprep.subr.mxu0 0.0
    %117 = vmatpush1.msra.mxu0 %v88
    %118 = vmatprep.subr.mxu0 0.0
    %119 = vmatpush1.msra.mxu0 %v89
    %120 = vmatprep.subr.mxu0 0.0
    %121 = vmatpush1.msra.mxu0 %v90
    %122 = vmatprep.subr.mxu0 0.0
    %123 = vmatpush1.msra.mxu0 %v91
    %124 = vmatprep.subr.mxu0 0.0
    %125 = vmatpush1.msra.mxu0 %v92
    %126 = vmatprep.subr.mxu0 0.0
    %127 = vmatpush1.msra.mxu0 %v93
    %128 = vmatprep.subr.mxu0 0.0
    %129 = vmatpush1.msra.mxu0 %v94
    %130 = vmatprep.subr.mxu0 0.0
    %131 = vmatpush1.msra.mxu0 %v95
    %132 = vmatprep.subr.mxu0 0.0
    %133 = vmatpush1.msra.mxu0 %v96
    %134 = vmatprep.subr.mxu0 0.0
    %135 = vmatpush1.msra.mxu0 %v97
    %136 = vmatprep.subr.mxu0 0.0
    %137 = vmatpush1.msra.mxu0 0.0
    %138 = vmatprep.subr.mxu0 0.0
    %139 = vmatpush1.msra.mxu0 0.0
    %140 = vmatprep.subr.mxu0 0.0
    %141 = vmatpush1.msra.mxu0 0.0
    %142 = vmatprep.subr.mxu0 0.0
    %143 = vmatpush1.msra.mxu0 0.0
    %144 = vmatprep.subr.mxu0 0.0
    %145 = vmatpush1.msra.mxu0 0.0
    %146 = vmatprep.subr.mxu0 0.0
    %147 = vmatpush1.msra.mxu0 0.0
    %148 = vmatprep.subr.mxu0 0.0
    %149 = vmatpush1.msra.mxu0 0.0
    %150 = vmatprep.subr.mxu0 0.0
    %151 = vmatpush1.msra.mxu0 0.0
    %152 = vmatprep.subr.mxu0 0.0
    %153 = vmatpush1.msra.mxu0 0.0
    %154 = vmatprep.subr.mxu0 0.0
    %155 = vmatpush1.msra.mxu0 0.0
    %156 = vmatprep.subr.mxu0 0.0
    %157 = vmatpush1.msra.mxu0 0.0
    %158 = vmatprep.subr.mxu0 0.0
    %159 = vmatpush1.msra.mxu0 0.0
    %160 = vmatprep.subr.mxu0 0.0
    %161 = vmatpush1.msra.mxu0 0.0
    %162 = vmatprep.subr.mxu0 0.0
    %163 = vmatpush1.msra.mxu0 0.0
    %164 = vmatprep.subr.mxu0 0.0
    %165 = vmatpush1.msra.mxu0 0.0
    %166 = vmatprep.subr.mxu0 0.0
    %167 = vmatpush1.msra.mxu0 0.0
    %168 = vmatprep.mubr.f32.mxu0 0.0
    %169 = vmatmul.mubr.f32.gmra.mrb[0].mxu0 %v80
    %v170 = vpop.f32.mrb[0].mxu0
    %v171 = vadd.f32 %v102, %v170
    %v172 = vpop.f32.mrb[0].mxu0
    %173 = vdwg.mxu0
    %v174 = vmax.f32 %v171, 0.0
    %v175 = vld [vmem:[%s4] sm:$0x1]
    %v176 = vld [vmem:[#allocation7] sm:$0xff]
    %v177 = vld [vmem:[#allocation7 + $0x8] sm:$0xff]
    %v178 = vld [vmem:[#allocation7 + $0x10] sm:$0xff]
    %v179 = vld [vmem:[#allocation7 + $0x18] sm:$0xff]
    %v180 = vld [vmem:[#allocation7 + $0x20] sm:$0xff]
    %v181 = vld [vmem:[#allocation7 + $0x28] sm:$0xff]
    %v182 = vld [vmem:[#allocation7 + $0x30] sm:$0xff]
    %v183 = vld [vmem:[#allocation7 + $0x38] sm:$0xff]
    %v184 = vld [vmem:[#allocation7 + $0x40] sm:$0xff]
    %v185 = vld [vmem:[#allocation7 + $0x48] sm:$0xff]
    %v186 = vld [vmem:[#allocation7 + $0x50] sm:$0xff]
    %v187 = vld [vmem:[#allocation7 + $0x58] sm:$0xff]
    %v188 = vld [vmem:[#allocation7 + $0x60] sm:$0xff]
    %v189 = vld [vmem:[#allocation7 + $0x68] sm:$0xff]
    %v190 = vld [vmem:[#allocation7 + $0x70] sm:$0xff]
    %v191 = vld [vmem:[#allocation7 + $0x78] sm:$0xff]
    %v193 = vlaneseq
    %v194 = vshrl.u32 %v193, 7
    %v195 = vsub.s32 0, %v194
    %v196 = vrot.slane %v175, %v195
    %198 = vmatprep.subr.mxu0 0.0
    %199 = vmatpush1.msra.mxu0 %v176
    %200 = vmatprep.subr.mxu0 0.0
    %201 = vmatpush1.msra.mxu0 %v177
    %202 = vmatprep.subr.mxu0 0.0
    %203 = vmatpush1.msra.mxu0 %v178
    %204 = vmatprep.subr.mxu0 0.0
    %205 = vmatpush1.msra.mxu0 %v179
    %206 = vmatprep.subr.mxu0 0.0
    %207 = vmatpush1.msra.mxu0 %v180
    %208 = vmatprep.subr.mxu0 0.0
    %209 = vmatpush1.msra.mxu0 %v181
    %210 = vmatprep.subr.mxu0 0.0
    %211 = vmatpush1.msra.mxu0 %v182
    %212 = vmatprep.subr.mxu0 0.0
    %213 = vmatpush1.msra.mxu0 %v183
    %214 = vmatprep.subr.mxu0 0.0
    %215 = vmatpush1.msra.mxu0 %v184
    %216 = vmatprep.subr.mxu0 0.0
    %217 = vmatpush1.msra.mxu0 %v185
    %218 = vmatprep.subr.mxu0 0.0
    %219 = vmatpush1.msra.mxu0 %v186
    %220 = vmatprep.subr.mxu0 0.0
    %221 = vmatpush1.msra.mxu0 %v187
    %222 = vmatprep.subr.mxu0 0.0
    %223 = vmatpush1.msra.mxu0 %v188
    %224 = vmatprep.subr.mxu0 0.0
    %225 = vmatpush1.msra.mxu0 %v189
    %226 = vmatprep.subr.mxu0 0.0
    %227 = vmatpush1.msra.mxu0 %v190
    %228 = vmatprep.subr.mxu0 0.0
    %229 = vmatpush1.msra.mxu0 %v191
    %230 = vmatprep.subr.mxu0 0.0
    %231 = vmatpush1.msra.mxu0 0.0
    %232 = vmatprep.subr.mxu0 0.0
    %233 = vmatpush1.msra.mxu0 0.0
    %234 = vmatprep.subr.mxu0 0.0
    %235 = vmatpush1.msra.mxu0 0.0
    %236 = vmatprep.subr.mxu0 0.0
    %237 = vmatpush1.msra.mxu0 0.0
    %238 = vmatprep.subr.mxu0 0.0
    %239 = vmatpush1.msra.mxu0 0.0
    %240 = vmatprep.subr.mxu0 0.0
    %241 = vmatpush1.msra.mxu0 0.0
    %242 = vmatprep.subr.mxu0 0.0
    %243 = vmatpush1.msra.mxu0 0.0
    %244 = vmatprep.subr.mxu0 0.0
    %245 = vmatpush1.msra.mxu0 0.0
    %246 = vmatprep.subr.mxu0 0.0
    %247 = vmatpush1.msra.mxu0 0.0
    %248 = vmatprep.subr.mxu0 0.0
    %249 = vmatpush1.msra.mxu0 0.0
    %250 = vmatprep.subr.mxu0 0.0
    %251 = vmatpush1.msra.mxu0 0.0
    %252 = vmatprep.subr.mxu0 0.0
    %253 = vmatpush1.msra.mxu0 0.0
    %254 = vmatprep.subr.mxu0 0.0
    %255 = vmatpush1.msra.mxu0 0.0
    %256 = vmatprep.subr.mxu0 0.0
    %257 = vmatpush1.msra.mxu0 0.0
    %258 = vmatprep.subr.mxu0 0.0
    %259 = vmatpush1.msra.mxu0 0.0
    %260 = vmatprep.subr.mxu0 0.0
    %261 = vmatpush1.msra.mxu0 0.0
    %262 = vmatprep.mubr.f32.mxu0 0.0
    %263 = vmatmul.mubr.f32.gmra.mrb[0].mxu0 %v174
    %v264 = vpop.f32.mrb[0].mxu0
    %v265 = vadd.f32 %v196, %v264
    %v266 = vpop.f32.mrb[0].mxu0
    %267 = vdwg.mxu0
    %v268 = vmax.f32 %v265, 0.0
    %v269 = vld [vmem:[%s6] sm:$0x1]
    %v270 = vld [vmem:[#allocation8] sm:$0xff]
    %v271 = vld [vmem:[#allocation8 + $0x8] sm:$0xff]
    %v272 = vld [vmem:[#allocation8 + $0x10] sm:$0xff]
    %v273 = vld [vmem:[#allocation8 + $0x18] sm:$0xff]
    %v274 = vld [vmem:[#allocation8 + $0x20] sm:$0xff]
    %v275 = vld [vmem:[#allocation8 + $0x28] sm:$0xff]
    %v276 = vld [vmem:[#allocation8 + $0x30] sm:$0xff]
    %v277 = vld [vmem:[#allocation8 + $0x38] sm:$0xff]
    %v278 = vld [vmem:[#allocation8 + $0x40] sm:$0xff]
    %v279 = vld [vmem:[#allocation8 + $0x48] sm:$0xff]
    %v280 = vld [vmem:[#allocation8 + $0x50] sm:$0xff]
    %v281 = vld [vmem:[#allocation8 + $0x58] sm:$0xff]
    %v282 = vld [vmem:[#allocation8 + $0x60] sm:$0xff]
    %v283 = vld [vmem:[#allocation8 + $0x68] sm:$0xff]
    %v284 = vld [vmem:[#allocation8 + $0x70] sm:$0xff]
    %v285 = vld [vmem:[#allocation8 + $0x78] sm:$0xff]
    %v287 = vlaneseq
    %v288 = vshrl.u32 %v287, 7
    %v289 = vsub.s32 0, %v288
    %v290 = vrot.slane %v269, %v289
    %292 = vmatprep.subr.mxu0 0.0
    %293 = vmatpush1.msra.mxu0 %v270
    %294 = vmatprep.subr.mxu0 0.0
    %295 = vmatpush1.msra.mxu0 %v271
    %296 = vmatprep.subr.mxu0 0.0
    %297 = vmatpush1.msra.mxu0 %v272
    %298 = vmatprep.subr.mxu0 0.0
    %299 = vmatpush1.msra.mxu0 %v273
    %300 = vmatprep.subr.mxu0 0.0
    %301 = vmatpush1.msra.mxu0 %v274
    %302 = vmatprep.subr.mxu0 0.0
    %303 = vmatpush1.msra.mxu0 %v275
    %304 = vmatprep.subr.mxu0 0.0
    %305 = vmatpush1.msra.mxu0 %v276
    %306 = vmatprep.subr.mxu0 0.0
    %307 = vmatpush1.msra.mxu0 %v277
    %308 = vmatprep.subr.mxu0 0.0
    %309 = vmatpush1.msra.mxu0 %v278
    %310 = vmatprep.subr.mxu0 0.0
    %311 = vmatpush1.msra.mxu0 %v279
    %312 = vmatprep.subr.mxu0 0.0
    %313 = vmatpush1.msra.mxu0 %v280
    %314 = vmatprep.subr.mxu0 0.0
    %315 = vmatpush1.msra.mxu0 %v281
    %316 = vmatprep.subr.mxu0 0.0
    %317 = vmatpush1.msra.mxu0 %v282
    %318 = vmatprep.subr.mxu0 0.0
    %319 = vmatpush1.msra.mxu0 %v283
    %320 = vmatprep.subr.mxu0 0.0
    %321 = vmatpush1.msra.mxu0 %v284
    %322 = vmatprep.subr.mxu0 0.0
    %323 = vmatpush1.msra.mxu0 %v285
    %324 = vmatprep.subr.mxu0 0.0
    %325 = vmatpush1.msra.mxu0 0.0
    %326 = vmatprep.subr.mxu0 0.0
    %327 = vmatpush1.msra.mxu0 0.0
    %328 = vmatprep.subr.mxu0 0.0
    %329 = vmatpush1.msra.mxu0 0.0
    %330 = vmatprep.subr.mxu0 0.0
    %331 = vmatpush1.msra.mxu0 0.0
    %332 = vmatprep.subr.mxu0 0.0
    %333 = vmatpush1.msra.mxu0 0.0
    %334 = vmatprep.subr.mxu0 0.0
    %335 = vmatpush1.msra.mxu0 0.0
    %336 = vmatprep.subr.mxu0 0.0
    %337 = vmatpush1.msra.mxu0 0.0
    %338 = vmatprep.subr.mxu0 0.0
    %339 = vmatpush1.msra.mxu0 0.0
    %340 = vmatprep.subr.mxu0 0.0
    %341 = vmatpush1.msra.mxu0 0.0
    %342 = vmatprep.subr.mxu0 0.0
    %343 = vmatpush1.msra.mxu0 0.0
    %344 = vmatprep.subr.mxu0 0.0
    %345 = vmatpush1.msra.mxu0 0.0
    %346 = vmatprep.subr.mxu0 0.0
    %347 = vmatpush1.msra.mxu0 0.0
    %348 = vmatprep.subr.mxu0 0.0
    %349 = vmatpush1.msra.mxu0 0.0
    %350 = vmatprep.subr.mxu0 0.0
    %351 = vmatpush1.msra.mxu0 0.0
    %352 = vmatprep.subr.mxu0 0.0
    %353 = vmatpush1.msra.mxu0 0.0
    %354 = vmatprep.subr.mxu0 0.0
    %355 = vmatpush1.msra.mxu0 0.0
    %356 = vmatprep.mubr.f32.mxu0 0.0
    %357 = vmatmul.mubr.f32.gmra.mrb[0].mxu0 %v268
    %v358 = vpop.f32.mrb[0].mxu0
    %v359 = vadd.f32 %v290, %v358
    %v360 = vpop.f32.mrb[0].mxu0
    %361 = vdwg.mxu0
    %362 = vst [vmem:[#allocation10] sm:$0xff] %v359
    // Predicated region
    $region46: #{tpu_custom_call.1} parent=1 // pred_check
      _
    $region47: #{tpu_custom_call.1} parent=1 // pred_check_branch
      %364 = sbr.rel (0) target = $region49
    $region48: #{tpu_custom_call.1} parent=1 // pred_region
      %s366 = ssub.s32 128, 128
      %367 = vsyncadd [#allocation4], %s366
      %s369 = sshll.u32 [#allocation10], 4
      %s370 = int_to_ptr.vmem [resolvable:$true] %s369
      %372 = dma.vmem_to_hbm [thread:$0]  %s370, 128, %s7, [#allocation4]
    $region49: #{tpu_custom_call.1} parent=1 // pred_fallthru
      _
    // Predicated region
    $region50: #{tpu_custom_call.1} parent=1 // pred_check
      _
    $region51: #{tpu_custom_call.1} parent=1 // pred_check_branch
      %374 = sbr.rel (0) target = $region53
    $region52: #{tpu_custom_call.1} parent=1 // pred_region
      %375 = dma.done [#allocation4], 128
    $region53: #{tpu_custom_call.1} parent=1 // pred_fallthru
      _
    %376 = vsyncpa [#allocation3], 1
    %377 = vsyncpa [#allocation6], 1
    %378 = vsyncpa [#allocation9], 1
    %379 = vsyncpa [#allocation4], 1

</llo_original>
